<compile_context>
chip_gen: v6e
topology: v6e:2x2x1
jax: 0.10.0
libtpu: 0.0.40
codegen_flags: <defaults>
</compile_context>

<pallas_src>
import functools

import jax
import jax.numpy as jnp
from jax.experimental import pallas as pl
from jax.experimental.pallas import tpu as pltpu

N_BITS = 8
QMAX = 2.0 ** (N_BITS - 1) - 1.0   # 127
QMIN = -(2.0 ** (N_BITS - 1))      # -128
# TODO(synk): some symmetric quantizers clamp to [-127, 127]; match the
# reference quantizer's range if it differs.

_LANE = 128          # TPU lane width: pixels are laid out lane-dense
_ROWS_MAX = 1024     # max pixel-rows (x128 lanes) per grid step (~16 MiB dbl-buffered)
_BATCH_TILE_MAX = 32 # max half-batch samples fused per grid step (keeps unroll sane)
_N_EPS = 3           # leading channels that go through the CFG combine


def _largest_divisor_leq(n, cap):
    cap = max(1, min(cap, n))
    for d in range(cap, 0, -1):
        if n % d == 0:
            return d
    return 1


# ---------------------------------------------------------------------------
# Fused kernel: fake-quant act -> quantized 1x1 conv -> +precomputed scalars
#               (CFG already folded) -> [eps | rest] for both batch halves.
# ---------------------------------------------------------------------------
def _fused_forward_kernel(inv_a_ref, wq_ref, add_ref,   # SMEM scalar tables
                          x_ref,                        # VMEM activations
                          out_ref,                      # VMEM output
                          *, b_tile, c_in, c_out):
    # x_ref   : (b_tile, c_in, R, 128)   f32 -- pixels of b_tile half-batch samples
    # out_ref : (2, b_tile*c_out, R, 128) f32 -- [0]=cond-half rows, [1]=uncond-half rows
    # add_ref : (2*c_out, half_n) SMEM   -- row c      : eps-combined / cond scalar
    #                                       row c_out+c: uncond scalar (rest channels)
    b0 = pl.program_id(0) * b_tile
    inv_a = inv_a_ref[0]

    for i in range(b_tile):
        b = b0 + i
        x = x_ref[i, :, :, :]                                   # (c_in, R, 128)
        # int8 codes in f32 (dequant scale a_s is folded into wq_eff)
        codes = jnp.clip(jnp.round(x * inv_a), QMIN, QMAX)

        for c in range(c_out):
            # K=3 contraction as scalar-broadcast FMAs on dense (R,128) tiles.
            acc = codes[0] * wq_ref[0, c]
            for k in range(1, c_in):
                acc = acc + codes[k] * wq_ref[k, c]

            oc = i * c_out + c
            if c < _N_EPS:
                # CFG combine already folded into the scalar -> same eps tile
                # for both halves; store it twice.
                val = acc + add_ref[c, b]
                out_ref[0, oc, :, :] = val
                out_ref[1, oc, :, :] = val
            else:
                # "rest" channels pass through per half.
                out_ref[0, oc, :, :] = acc + add_ref[c, b]
                out_ref[1, oc, :, :] = acc + add_ref[c_out + c, b]


# ---------------------------------------------------------------------------
# Parameters for the synthetic quantized inner model (stand-in for the DiT):
# a fake-quantized 1x1 conv (3 -> 6 channels) + additive t / class conditioning.
# ---------------------------------------------------------------------------
def init_params(key, c_in=3, c_out=6, num_classes=10):
    k1, k2, k3, k4 = jax.random.split(key, 4)
    return dict(
        w=jax.random.normal(k1, (c_in, c_out), jnp.float32) * 0.2,
        b=jax.random.normal(k2, (1, c_out), jnp.float32) * 0.02,
        class_emb=jax.random.normal(k3, (num_classes, c_out), jnp.float32) * 0.02,
        t_freq=jax.random.normal(k4, (c_out,), jnp.float32),
    )


def calibrate_act_scale(params, x_calib):
    """One-off PTQ calibration of the activation quantizer (QuantModule
    running-stat equivalent) so the forward pass needs no extra abs-max HBM
    pass over the activations."""
    a_scale = jnp.maximum(jnp.max(jnp.abs(x_calib)) / QMAX, 1e-8)
    return dict(params, a_scale=a_scale.reshape(1).astype(jnp.float32))


# ---------------------------------------------------------------------------
# QuantModel.forward (fully fused)
# ---------------------------------------------------------------------------
def quant_model_forward(x, t, y, cfg_scale, params):
    n, c_in, h, w = x.shape
    half_n = n // 2
    hw = h * w
    c_out = params["w"].shape[1]

    # ---- tiny parameter-sized XLA glue (no activation-sized traffic) -------
    a_s = params["a_scale"].reshape(()).astype(jnp.float32)
    inv_a = (1.0 / a_s).reshape(1)

    # Fake-quantize the (c_in, c_out) weight once and fold the activation
    # dequant scale into it (hoisted out of the grid).
    wgt = params["w"].astype(jnp.float32)
    w_scale = jnp.maximum(jnp.max(jnp.abs(wgt)) / QMAX, 1e-8)
    wq = jnp.clip(jnp.round(wgt / w_scale), QMIN, QMAX) * w_scale       # (c_in, c_out)
    wq_eff = (a_s * wq).astype(jnp.float32)
    # TODO(synk): for MXU-sized channel dims on v5e/v6e, swap this fake-quant
    # path for a true int8xint8 matmul with an a_s*w_s epilogue scale.

    # Per-(sample, channel) conditioning with bias folded in, plus the CFG
    # combine pre-applied on the eps channels (pure scalar math since both
    # halves see identical activations).
    s = jnp.asarray(cfg_scale, jnp.float32)
    t_emb = jnp.sin(t.astype(jnp.float32)[:, None] * params["t_freq"][None, :])
    y_emb = params["class_emb"][y]
    add = (params["b"] + t_emb + y_emb).astype(jnp.float32)             # (N, c_out)
    add_c, add_u = add[:half_n], add[half_n:]
    eps_add = add_u + s * (add_c - add_u)                               # (half_n, c_out)
    add0 = jnp.concatenate([eps_add[:, :_N_EPS], add_c[:, _N_EPS:]], axis=1)
    add1 = jnp.concatenate([eps_add[:, :_N_EPS], add_u[:, _N_EPS:]], axis=1)
    add_eff = jnp.concatenate([add0.T, add1.T], axis=0)                 # (2*c_out, half_n)

    # ---- lane-dense activation view: (N/2, Cin, rows, 128) ------------------
    x_half = x[:half_n].reshape(half_n, c_in, hw).astype(jnp.float32)
    hw_pad = ((hw + _LANE - 1) // _LANE) * _LANE
    if hw_pad != hw:
        # TODO(synk): this pad (and the final slice) each cost an extra HBM
        # pass; handle the ragged lane tail with in-kernel masked stores if
        # non-128-divisible H*W shapes are hot.
        x_half = jnp.pad(x_half, ((0, 0), (0, 0), (0, hw_pad - hw)))
    rows = hw_pad // _LANE
    x4 = x_half.reshape(half_n, c_in, rows, _LANE)

    # ---- tiling: large per-step footprint, >=2 grid steps when possible -----
    if rows >= _ROWS_MAX:
        r_tile, b_tile = _ROWS_MAX, 1
    else:
        r_tile = rows
        b_tile = _largest_divisor_leq(
            half_n, min(_BATCH_TILE_MAX, max(1, _ROWS_MAX // max(rows, 1))))
    if (half_n // b_tile) * pl.cdiv(rows, r_tile) == 1:
        # Keep both v7x TensorCores busy: force >=2 steps when we can split.
        if half_n >= 2:
            b_tile = _largest_divisor_leq(half_n, max(1, half_n // 2))
        elif rows >= 16:
            r_tile = ((rows + 15) // 16) * 8    # ~half the rows, multiple of 8

    grid = (half_n // b_tile, pl.cdiv(rows, r_tile))

    kernel = functools.partial(_fused_forward_kernel,
                               b_tile=b_tile, c_in=c_in, c_out=c_out)

    pixels = half_n * hw_pad
    cost = pl.CostEstimate(
        flops=60 * pixels,
        transcendentals=0,
        bytes_accessed=pixels * (c_in * 4 + 2 * c_out * 4),
    )

    # Output layout (2, half_n*c_out, rows, 128): axis 0 is [cond-half, uncond-half];
    # a contiguous reshape turns it into the final (N, c_out, H, W) for free.
    out4 = pl.pallas_call(
        kernel,
        out_shape=jax.ShapeDtypeStruct((2, half_n * c_out, rows, _LANE), jnp.float32),
        grid=grid,
        in_specs=[
            pl.BlockSpec(memory_space=pltpu.MemorySpace.SMEM),   # inv_a   (1,)
            pl.BlockSpec(memory_space=pltpu.MemorySpace.SMEM),   # wq_eff  (c_in, c_out)
            pl.BlockSpec(memory_space=pltpu.MemorySpace.SMEM),   # add_eff (2*c_out, half_n)
            pl.BlockSpec((b_tile, c_in, r_tile, _LANE), lambda b, r: (b, 0, r, 0)),
        ],
        out_specs=pl.BlockSpec((2, b_tile * c_out, r_tile, _LANE),
                               lambda b, r: (0, b, 0, r)),
        compiler_params=pltpu.CompilerParams(
            dimension_semantics=("parallel", "parallel"),
            vmem_limit_bytes=40 << 20),
        cost_estimate=cost,
    )(inv_a, wq_eff, add_eff, x4)

    out = out4.reshape(n, c_out, hw_pad)[:, :, :hw].reshape(n, c_out, h, w)
    return out


# ---------------------------------------------------------------------------
# Pure-JAX reference (literal, unfused transcription of QuantModel.forward)
# ---------------------------------------------------------------------------
def reference_forward(x, t, y, cfg_scale, params):
    n, c_in, h, w = x.shape
    half = x[: n // 2]
    combined = jnp.concatenate([half, half], axis=0)

    # inner quantized model: fake-quant act & weight 1x1 conv + conditioning
    a_s = params["a_scale"].reshape(())
    inv_a = 1.0 / a_s
    wgt = params["w"]
    w_s = jnp.maximum(jnp.max(jnp.abs(wgt)) / QMAX, 1e-8)
    wq = jnp.clip(jnp.round(wgt / w_s), QMIN, QMAX) * w_s
    xf = jnp.transpose(combined, (0, 2, 3, 1)).reshape(n * h * w, c_in)
    xq = jnp.clip(jnp.round(xf * inv_a), QMIN, QMAX) * a_s
    conv = (xq[:, :, None] * wq[None, :, :]).sum(axis=1) + params["b"]
    c_out = wgt.shape[1]
    mo = conv.reshape(n, h, w, c_out).transpose(0, 3, 1, 2)
    t_emb = jnp.sin(t[:, None] * params["t_freq"][None, :])
    y_emb = params["class_emb"][y]
    mo = mo + (t_emb + y_emb)[:, :, None, None]

    eps, rest = mo[:, :3], mo[:, 3:]
    cond_eps, uncond_eps = jnp.split(eps, 2, axis=0)
    half_eps = uncond_eps + cfg_scale * (cond_eps - uncond_eps)
    eps = jnp.concatenate([half_eps, half_eps], axis=0)
    return jnp.concatenate([eps, rest], axis=1)


# TODO(synk): set_quant_state / set_running_stat / set_grad_ckpt are stateful
# module toggles with no kernel equivalent; only the forward pass is implemented.

if __name__ == "__main__":
    key = jax.random.PRNGKey(0)
    kx, kt, ky, kp = jax.random.split(key, 4)

    N, C_IN, H, W = 4, 3, 16, 16            # N = 2 * (cond batch)
    x = jax.random.normal(kx, (N, C_IN, H, W), jnp.float32)
    t = jax.random.uniform(kt, (N,), jnp.float32, 0.0, 1000.0)
    y = jax.random.randint(ky, (N,), 0, 10)
    cfg_scale = 1.5

    params = init_params(kp, c_in=C_IN, c_out=6, num_classes=10)
    params = calibrate_act_scale(params, x)   # one-off PTQ calibration

    fwd = jax.jit(quant_model_forward)
    out = jax.block_until_ready(fwd(x, t, y, cfg_scale, params))
    assert out.shape == (N, 6, H, W), out.shape

    ref = reference_forward(x, t, y, cfg_scale, params)
    assert jnp.allclose(out, ref, rtol=1e-4, atol=1e-4), float(jnp.max(jnp.abs(out - ref)))

    print("KERNEL_OK")
</pallas_src>

<mosaic_0001>
module attributes {stable_mosaic.version = 11 : i64} {
  func.func @_fused_forward_kernel(%arg0: i32, %arg1: i32, %arg2: memref<1xf32, #tpu.memory_space<smem>>, %arg3: memref<3x6xf32, #tpu.memory_space<smem>>, %arg4: memref<12x2xf32, #tpu.memory_space<smem>>, %arg5: memref<1x3x2x128xf32, #tpu.memory_space<vmem>>, %arg6: memref<2x6x2x128xf32, #tpu.memory_space<vmem>>) attributes {dimension_semantics = [#tpu.dimension_semantics<parallel>, #tpu.dimension_semantics<parallel>], iteration_bounds = array<i64: 2, 1>, scalar_prefetch = 0 : i64, scratch_operands = 0 : i64, tpu.core_type = #tpu.core_type<tc>, window_params = [{transform_indices = @transform_0, window_bounds = array<i64: 1>}, {transform_indices = @transform_1, window_bounds = array<i64: 3, 6>}, {transform_indices = @transform_2, window_bounds = array<i64: 12, 2>}, {transform_indices = @transform_3, window_bounds = array<i64: 1, 3, 2, 128>}, {transform_indices = @transform_4, window_bounds = array<i64: 2, 6, 2, 128>}]} {
    %c1_i32 = arith.constant 1 : i32
    %0 = arith.muli %arg0, %c1_i32 : i32
    %c0 = arith.constant 0 : index
    %1 = memref.load %arg2[%c0] : memref<1xf32, #tpu.memory_space<smem>>
    %c0_i32 = arith.constant 0 : i32
    %2 = arith.addi %0, %c0_i32 : i32
    %c0_0 = arith.constant 0 : index
    %c0_1 = arith.constant 0 : index
    %c0_2 = arith.constant 0 : index
    %c0_3 = arith.constant 0 : index
    %3 = vector.load %arg5[%c0_0, %c0_1, %c0_2, %c0_3] : memref<1x3x2x128xf32, #tpu.memory_space<vmem>>, vector<1x3x2x128xf32>
    %4 = vector.shape_cast %3 : vector<1x3x2x128xf32> to vector<3x2x128xf32>
    %5 = vector.broadcast %1 : f32 to vector<3x2x128xf32>
    %6 = arith.mulf %4, %5 : vector<3x2x128xf32>
    %7 = math.roundeven %6 : vector<3x2x128xf32>
    %cst = arith.constant -1.280000e+02 : f32
    %cst_4 = arith.constant 1.270000e+02 : f32
    %8 = vector.broadcast %cst : f32 to vector<3x2x128xf32>
    %9 = arith.maximumf %8, %7 : vector<3x2x128xf32>
    %10 = vector.broadcast %cst_4 : f32 to vector<3x2x128xf32>
    %11 = arith.minimumf %10, %9 : vector<3x2x128xf32>
    %12 = vector.extract_strided_slice %11 {offsets = [0, 0, 0], sizes = [1, 2, 128], strides = [1, 1, 1]} : vector<3x2x128xf32> to vector<1x2x128xf32>
    %13 = vector.shape_cast %12 : vector<1x2x128xf32> to vector<2x128xf32>
    %c0_5 = arith.constant 0 : index
    %c0_6 = arith.constant 0 : index
    %14 = memref.load %arg3[%c0_5, %c0_6] : memref<3x6xf32, #tpu.memory_space<smem>>
    %15 = vector.broadcast %14 : f32 to vector<2x128xf32>
    %16 = arith.mulf %13, %15 : vector<2x128xf32>
    %17 = vector.extract_strided_slice %11 {offsets = [1, 0, 0], sizes = [1, 2, 128], strides = [1, 1, 1]} : vector<3x2x128xf32> to vector<1x2x128xf32>
    %18 = vector.shape_cast %17 : vector<1x2x128xf32> to vector<2x128xf32>
    %c1 = arith.constant 1 : index
    %c0_7 = arith.constant 0 : index
    %19 = memref.load %arg3[%c1, %c0_7] : memref<3x6xf32, #tpu.memory_space<smem>>
    %20 = vector.broadcast %19 : f32 to vector<2x128xf32>
    %21 = arith.mulf %18, %20 : vector<2x128xf32>
    %22 = arith.addf %16, %21 : vector<2x128xf32>
    %23 = vector.extract_strided_slice %11 {offsets = [2, 0, 0], sizes = [1, 2, 128], strides = [1, 1, 1]} : vector<3x2x128xf32> to vector<1x2x128xf32>
    %24 = vector.shape_cast %23 : vector<1x2x128xf32> to vector<2x128xf32>
    %c2 = arith.constant 2 : index
    %c0_8 = arith.constant 0 : index
    %25 = memref.load %arg3[%c2, %c0_8] : memref<3x6xf32, #tpu.memory_space<smem>>
    %26 = vector.broadcast %25 : f32 to vector<2x128xf32>
    %27 = arith.mulf %24, %26 : vector<2x128xf32>
    %28 = arith.addf %22, %27 : vector<2x128xf32>
    %c0_9 = arith.constant 0 : index
    %29 = arith.index_cast %2 : i32 to index
    %30 = memref.load %arg4[%c0_9, %29] : memref<12x2xf32, #tpu.memory_space<smem>>
    %31 = vector.broadcast %30 : f32 to vector<2x128xf32>
    %32 = arith.addf %28, %31 : vector<2x128xf32>
    %c0_10 = arith.constant 0 : index
    %c0_11 = arith.constant 0 : index
    %c0_12 = arith.constant 0 : index
    %c0_13 = arith.constant 0 : index
    %33 = vector.load %arg6[%c0_10, %c0_11, %c0_12, %c0_13] : memref<2x6x2x128xf32, #tpu.memory_space<vmem>>, vector<1x1x2x128xf32>
    %34 = vector.shape_cast %33 : vector<1x1x2x128xf32> to vector<2x128xf32>
    %35 = vector.shape_cast %32 : vector<2x128xf32> to vector<1x1x2x128xf32>
    tpu.vector_store %arg6[%c0_10, %c0_11, %c0_12, %c0_13], %35 {strides = array<i32>} : memref<2x6x2x128xf32, #tpu.memory_space<vmem>>, vector<1x1x2x128xf32>,
    %c1_14 = arith.constant 1 : index
    %c0_15 = arith.constant 0 : index
    %c0_16 = arith.constant 0 : index
    %c0_17 = arith.constant 0 : index
    %36 = vector.load %arg6[%c1_14, %c0_15, %c0_16, %c0_17] : memref<2x6x2x128xf32, #tpu.memory_space<vmem>>, vector<1x1x2x128xf32>
    %37 = vector.shape_cast %36 : vector<1x1x2x128xf32> to vector<2x128xf32>
    %38 = vector.shape_cast %32 : vector<2x128xf32> to vector<1x1x2x128xf32>
    tpu.vector_store %arg6[%c1_14, %c0_15, %c0_16, %c0_17], %38 {strides = array<i32>} : memref<2x6x2x128xf32, #tpu.memory_space<vmem>>, vector<1x1x2x128xf32>,
    %39 = vector.extract_strided_slice %11 {offsets = [0, 0, 0], sizes = [1, 2, 128], strides = [1, 1, 1]} : vector<3x2x128xf32> to vector<1x2x128xf32>
    %40 = vector.shape_cast %39 : vector<1x2x128xf32> to vector<2x128xf32>
    %c0_18 = arith.constant 0 : index
    %c1_19 = arith.constant 1 : index
    %41 = memref.load %arg3[%c0_18, %c1_19] : memref<3x6xf32, #tpu.memory_space<smem>>
    %42 = vector.broadcast %41 : f32 to vector<2x128xf32>
    %43 = arith.mulf %40, %42 : vector<2x128xf32>
    %44 = vector.extract_strided_slice %11 {offsets = [1, 0, 0], sizes = [1, 2, 128], strides = [1, 1, 1]} : vector<3x2x128xf32> to vector<1x2x128xf32>
    %45 = vector.shape_cast %44 : vector<1x2x128xf32> to vector<2x128xf32>
    %c1_20 = arith.constant 1 : index
    %c1_21 = arith.constant 1 : index
    %46 = memref.load %arg3[%c1_20, %c1_21] : memref<3x6xf32, #tpu.memory_space<smem>>
    %47 = vector.broadcast %46 : f32 to vector<2x128xf32>
    %48 = arith.mulf %45, %47 : vector<2x128xf32>
    %49 = arith.addf %43, %48 : vector<2x128xf32>
    %50 = vector.extract_strided_slice %11 {offsets = [2, 0, 0], sizes = [1, 2, 128], strides = [1, 1, 1]} : vector<3x2x128xf32> to vector<1x2x128xf32>
    %51 = vector.shape_cast %50 : vector<1x2x128xf32> to vector<2x128xf32>
    %c2_22 = arith.constant 2 : index
    %c1_23 = arith.constant 1 : index
    %52 = memref.load %arg3[%c2_22, %c1_23] : memref<3x6xf32, #tpu.memory_space<smem>>
    %53 = vector.broadcast %52 : f32 to vector<2x128xf32>
    %54 = arith.mulf %51, %53 : vector<2x128xf32>
    %55 = arith.addf %49, %54 : vector<2x128xf32>
    %c1_24 = arith.constant 1 : index
    %56 = arith.index_cast %2 : i32 to index
    %57 = memref.load %arg4[%c1_24, %56] : memref<12x2xf32, #tpu.memory_space<smem>>
    %58 = vector.broadcast %57 : f32 to vector<2x128xf32>
    %59 = arith.addf %55, %58 : vector<2x128xf32>
    %c0_25 = arith.constant 0 : index
    %c1_26 = arith.constant 1 : index
    %c0_27 = arith.constant 0 : index
    %c0_28 = arith.constant 0 : index
    %60 = vector.load %arg6[%c0_25, %c1_26, %c0_27, %c0_28] : memref<2x6x2x128xf32, #tpu.memory_space<vmem>>, vector<1x1x2x128xf32>
    %61 = vector.shape_cast %60 : vector<1x1x2x128xf32> to vector<2x128xf32>
    %62 = vector.shape_cast %59 : vector<2x128xf32> to vector<1x1x2x128xf32>
    tpu.vector_store %arg6[%c0_25, %c1_26, %c0_27, %c0_28], %62 {strides = array<i32>} : memref<2x6x2x128xf32, #tpu.memory_space<vmem>>, vector<1x1x2x128xf32>,
    %c1_29 = arith.constant 1 : index
    %c1_30 = arith.constant 1 : index
    %c0_31 = arith.constant 0 : index
    %c0_32 = arith.constant 0 : index
    %63 = vector.load %arg6[%c1_29, %c1_30, %c0_31, %c0_32] : memref<2x6x2x128xf32, #tpu.memory_space<vmem>>, vector<1x1x2x128xf32>
    %64 = vector.shape_cast %63 : vector<1x1x2x128xf32> to vector<2x128xf32>
    %65 = vector.shape_cast %59 : vector<2x128xf32> to vector<1x1x2x128xf32>
    tpu.vector_store %arg6[%c1_29, %c1_30, %c0_31, %c0_32], %65 {strides = array<i32>} : memref<2x6x2x128xf32, #tpu.memory_space<vmem>>, vector<1x1x2x128xf32>,
    %66 = vector.extract_strided_slice %11 {offsets = [0, 0, 0], sizes = [1, 2, 128], strides = [1, 1, 1]} : vector<3x2x128xf32> to vector<1x2x128xf32>
    %67 = vector.shape_cast %66 : vector<1x2x128xf32> to vector<2x128xf32>
    %c0_33 = arith.constant 0 : index
    %c2_34 = arith.constant 2 : index
    %68 = memref.load %arg3[%c0_33, %c2_34] : memref<3x6xf32, #tpu.memory_space<smem>>
    %69 = vector.broadcast %68 : f32 to vector<2x128xf32>
    %70 = arith.mulf %67, %69 : vector<2x128xf32>
    %71 = vector.extract_strided_slice %11 {offsets = [1, 0, 0], sizes = [1, 2, 128], strides = [1, 1, 1]} : vector<3x2x128xf32> to vector<1x2x128xf32>
    %72 = vector.shape_cast %71 : vector<1x2x128xf32> to vector<2x128xf32>
    %c1_35 = arith.constant 1 : index
    %c2_36 = arith.constant 2 : index
    %73 = memref.load %arg3[%c1_35, %c2_36] : memref<3x6xf32, #tpu.memory_space<smem>>
    %74 = vector.broadcast %73 : f32 to vector<2x128xf32>
    %75 = arith.mulf %72, %74 : vector<2x128xf32>
    %76 = arith.addf %70, %75 : vector<2x128xf32>
    %77 = vector.extract_strided_slice %11 {offsets = [2, 0, 0], sizes = [1, 2, 128], strides = [1, 1, 1]} : vector<3x2x128xf32> to vector<1x2x128xf32>
    %78 = vector.shape_cast %77 : vector<1x2x128xf32> to vector<2x128xf32>
    %c2_37 = arith.constant 2 : index
    %c2_38 = arith.constant 2 : index
    %79 = memref.load %arg3[%c2_37, %c2_38] : memref<3x6xf32, #tpu.memory_space<smem>>
    %80 = vector.broadcast %79 : f32 to vector<2x128xf32>
    %81 = arith.mulf %78, %80 : vector<2x128xf32>
    %82 = arith.addf %76, %81 : vector<2x128xf32>
    %c2_39 = arith.constant 2 : index
    %83 = arith.index_cast %2 : i32 to index
    %84 = memref.load %arg4[%c2_39, %83] : memref<12x2xf32, #tpu.memory_space<smem>>
    %85 = vector.broadcast %84 : f32 to vector<2x128xf32>
    %86 = arith.addf %82, %85 : vector<2x128xf32>
    %c0_40 = arith.constant 0 : index
    %c2_41 = arith.constant 2 : index
    %c0_42 = arith.constant 0 : index
    %c0_43 = arith.constant 0 : index
    %87 = vector.load %arg6[%c0_40, %c2_41, %c0_42, %c0_43] : memref<2x6x2x128xf32, #tpu.memory_space<vmem>>, vector<1x1x2x128xf32>
    %88 = vector.shape_cast %87 : vector<1x1x2x128xf32> to vector<2x128xf32>
    %89 = vector.shape_cast %86 : vector<2x128xf32> to vector<1x1x2x128xf32>
    tpu.vector_store %arg6[%c0_40, %c2_41, %c0_42, %c0_43], %89 {strides = array<i32>} : memref<2x6x2x128xf32, #tpu.memory_space<vmem>>, vector<1x1x2x128xf32>,
    %c1_44 = arith.constant 1 : index
    %c2_45 = arith.constant 2 : index
    %c0_46 = arith.constant 0 : index
    %c0_47 = arith.constant 0 : index
    %90 = vector.load %arg6[%c1_44, %c2_45, %c0_46, %c0_47] : memref<2x6x2x128xf32, #tpu.memory_space<vmem>>, vector<1x1x2x128xf32>
    %91 = vector.shape_cast %90 : vector<1x1x2x128xf32> to vector<2x128xf32>
    %92 = vector.shape_cast %86 : vector<2x128xf32> to vector<1x1x2x128xf32>
    tpu.vector_store %arg6[%c1_44, %c2_45, %c0_46, %c0_47], %92 {strides = array<i32>} : memref<2x6x2x128xf32, #tpu.memory_space<vmem>>, vector<1x1x2x128xf32>,
    %93 = vector.extract_strided_slice %11 {offsets = [0, 0, 0], sizes = [1, 2, 128], strides = [1, 1, 1]} : vector<3x2x128xf32> to vector<1x2x128xf32>
    %94 = vector.shape_cast %93 : vector<1x2x128xf32> to vector<2x128xf32>
    %c0_48 = arith.constant 0 : index
    %c3 = arith.constant 3 : index
    %95 = memref.load %arg3[%c0_48, %c3] : memref<3x6xf32, #tpu.memory_space<smem>>
    %96 = vector.broadcast %95 : f32 to vector<2x128xf32>
    %97 = arith.mulf %94, %96 : vector<2x128xf32>
    %98 = vector.extract_strided_slice %11 {offsets = [1, 0, 0], sizes = [1, 2, 128], strides = [1, 1, 1]} : vector<3x2x128xf32> to vector<1x2x128xf32>
    %99 = vector.shape_cast %98 : vector<1x2x128xf32> to vector<2x128xf32>
    %c1_49 = arith.constant 1 : index
    %c3_50 = arith.constant 3 : index
    %100 = memref.load %arg3[%c1_49, %c3_50] : memref<3x6xf32, #tpu.memory_space<smem>>
    %101 = vector.broadcast %100 : f32 to vector<2x128xf32>
    %102 = arith.mulf %99, %101 : vector<2x128xf32>
    %103 = arith.addf %97, %102 : vector<2x128xf32>
    %104 = vector.extract_strided_slice %11 {offsets = [2, 0, 0], sizes = [1, 2, 128], strides = [1, 1, 1]} : vector<3x2x128xf32> to vector<1x2x128xf32>
    %105 = vector.shape_cast %104 : vector<1x2x128xf32> to vector<2x128xf32>
    %c2_51 = arith.constant 2 : index
    %c3_52 = arith.constant 3 : index
    %106 = memref.load %arg3[%c2_51, %c3_52] : memref<3x6xf32, #tpu.memory_space<smem>>
    %107 = vector.broadcast %106 : f32 to vector<2x128xf32>
    %108 = arith.mulf %105, %107 : vector<2x128xf32>
    %109 = arith.addf %103, %108 : vector<2x128xf32>
    %c3_53 = arith.constant 3 : index
    %110 = arith.index_cast %2 : i32 to index
    %111 = memref.load %arg4[%c3_53, %110] : memref<12x2xf32, #tpu.memory_space<smem>>
    %112 = vector.broadcast %111 : f32 to vector<2x128xf32>
    %113 = arith.addf %109, %112 : vector<2x128xf32>
    %c0_54 = arith.constant 0 : index
    %c3_55 = arith.constant 3 : index
    %c0_56 = arith.constant 0 : index
    %c0_57 = arith.constant 0 : index
    %114 = vector.load %arg6[%c0_54, %c3_55, %c0_56, %c0_57] : memref<2x6x2x128xf32, #tpu.memory_space<vmem>>, vector<1x1x2x128xf32>
    %115 = vector.shape_cast %114 : vector<1x1x2x128xf32> to vector<2x128xf32>
    %116 = vector.shape_cast %113 : vector<2x128xf32> to vector<1x1x2x128xf32>
    tpu.vector_store %arg6[%c0_54, %c3_55, %c0_56, %c0_57], %116 {strides = array<i32>} : memref<2x6x2x128xf32, #tpu.memory_space<vmem>>, vector<1x1x2x128xf32>,
    %c9 = arith.constant 9 : index
    %117 = arith.index_cast %2 : i32 to index
    %118 = memref.load %arg4[%c9, %117] : memref<12x2xf32, #tpu.memory_space<smem>>
    %119 = vector.broadcast %118 : f32 to vector<2x128xf32>
    %120 = arith.addf %109, %119 : vector<2x128xf32>
    %c1_58 = arith.constant 1 : index
    %c3_59 = arith.constant 3 : index
    %c0_60 = arith.constant 0 : index
    %c0_61 = arith.constant 0 : index
    %121 = vector.load %arg6[%c1_58, %c3_59, %c0_60, %c0_61] : memref<2x6x2x128xf32, #tpu.memory_space<vmem>>, vector<1x1x2x128xf32>
    %122 = vector.shape_cast %121 : vector<1x1x2x128xf32> to vector<2x128xf32>
    %123 = vector.shape_cast %120 : vector<2x128xf32> to vector<1x1x2x128xf32>
    tpu.vector_store %arg6[%c1_58, %c3_59, %c0_60, %c0_61], %123 {strides = array<i32>} : memref<2x6x2x128xf32, #tpu.memory_space<vmem>>, vector<1x1x2x128xf32>,
    %124 = vector.extract_strided_slice %11 {offsets = [0, 0, 0], sizes = [1, 2, 128], strides = [1, 1, 1]} : vector<3x2x128xf32> to vector<1x2x128xf32>
    %125 = vector.shape_cast %124 : vector<1x2x128xf32> to vector<2x128xf32>
    %c0_62 = arith.constant 0 : index
    %c4 = arith.constant 4 : index
    %126 = memref.load %arg3[%c0_62, %c4] : memref<3x6xf32, #tpu.memory_space<smem>>
    %127 = vector.broadcast %126 : f32 to vector<2x128xf32>
    %128 = arith.mulf %125, %127 : vector<2x128xf32>
    %129 = vector.extract_strided_slice %11 {offsets = [1, 0, 0], sizes = [1, 2, 128], strides = [1, 1, 1]} : vector<3x2x128xf32> to vector<1x2x128xf32>
    %130 = vector.shape_cast %129 : vector<1x2x128xf32> to vector<2x128xf32>
    %c1_63 = arith.constant 1 : index
    %c4_64 = arith.constant 4 : index
    %131 = memref.load %arg3[%c1_63, %c4_64] : memref<3x6xf32, #tpu.memory_space<smem>>
    %132 = vector.broadcast %131 : f32 to vector<2x128xf32>
    %133 = arith.mulf %130, %132 : vector<2x128xf32>
    %134 = arith.addf %128, %133 : vector<2x128xf32>
    %135 = vector.extract_strided_slice %11 {offsets = [2, 0, 0], sizes = [1, 2, 128], strides = [1, 1, 1]} : vector<3x2x128xf32> to vector<1x2x128xf32>
    %136 = vector.shape_cast %135 : vector<1x2x128xf32> to vector<2x128xf32>
    %c2_65 = arith.constant 2 : index
    %c4_66 = arith.constant 4 : index
    %137 = memref.load %arg3[%c2_65, %c4_66] : memref<3x6xf32, #tpu.memory_space<smem>>
    %138 = vector.broadcast %137 : f32 to vector<2x128xf32>
    %139 = arith.mulf %136, %138 : vector<2x128xf32>
    %140 = arith.addf %134, %139 : vector<2x128xf32>
    %c4_67 = arith.constant 4 : index
    %141 = arith.index_cast %2 : i32 to index
    %142 = memref.load %arg4[%c4_67, %141] : memref<12x2xf32, #tpu.memory_space<smem>>
    %143 = vector.broadcast %142 : f32 to vector<2x128xf32>
    %144 = arith.addf %140, %143 : vector<2x128xf32>
    %c0_68 = arith.constant 0 : index
    %c4_69 = arith.constant 4 : index
    %c0_70 = arith.constant 0 : index
    %c0_71 = arith.constant 0 : index
    %145 = vector.load %arg6[%c0_68, %c4_69, %c0_70, %c0_71] : memref<2x6x2x128xf32, #tpu.memory_space<vmem>>, vector<1x1x2x128xf32>
    %146 = vector.shape_cast %145 : vector<1x1x2x128xf32> to vector<2x128xf32>
    %147 = vector.shape_cast %144 : vector<2x128xf32> to vector<1x1x2x128xf32>
    tpu.vector_store %arg6[%c0_68, %c4_69, %c0_70, %c0_71], %147 {strides = array<i32>} : memref<2x6x2x128xf32, #tpu.memory_space<vmem>>, vector<1x1x2x128xf32>,
    %c10 = arith.constant 10 : index
    %148 = arith.index_cast %2 : i32 to index
    %149 = memref.load %arg4[%c10, %148] : memref<12x2xf32, #tpu.memory_space<smem>>
    %150 = vector.broadcast %149 : f32 to vector<2x128xf32>
    %151 = arith.addf %140, %150 : vector<2x128xf32>
    %c1_72 = arith.constant 1 : index
    %c4_73 = arith.constant 4 : index
    %c0_74 = arith.constant 0 : index
    %c0_75 = arith.constant 0 : index
    %152 = vector.load %arg6[%c1_72, %c4_73, %c0_74, %c0_75] : memref<2x6x2x128xf32, #tpu.memory_space<vmem>>, vector<1x1x2x128xf32>
    %153 = vector.shape_cast %152 : vector<1x1x2x128xf32> to vector<2x128xf32>
    %154 = vector.shape_cast %151 : vector<2x128xf32> to vector<1x1x2x128xf32>
    tpu.vector_store %arg6[%c1_72, %c4_73, %c0_74, %c0_75], %154 {strides = array<i32>} : memref<2x6x2x128xf32, #tpu.memory_space<vmem>>, vector<1x1x2x128xf32>,
    %155 = vector.extract_strided_slice %11 {offsets = [0, 0, 0], sizes = [1, 2, 128], strides = [1, 1, 1]} : vector<3x2x128xf32> to vector<1x2x128xf32>
    %156 = vector.shape_cast %155 : vector<1x2x128xf32> to vector<2x128xf32>
    %c0_76 = arith.constant 0 : index
    %c5 = arith.constant 5 : index
    %157 = memref.load %arg3[%c0_76, %c5] : memref<3x6xf32, #tpu.memory_space<smem>>
    %158 = vector.broadcast %157 : f32 to vector<2x128xf32>
    %159 = arith.mulf %156, %158 : vector<2x128xf32>
    %160 = vector.extract_strided_slice %11 {offsets = [1, 0, 0], sizes = [1, 2, 128], strides = [1, 1, 1]} : vector<3x2x128xf32> to vector<1x2x128xf32>
    %161 = vector.shape_cast %160 : vector<1x2x128xf32> to vector<2x128xf32>
    %c1_77 = arith.constant 1 : index
    %c5_78 = arith.constant 5 : index
    %162 = memref.load %arg3[%c1_77, %c5_78] : memref<3x6xf32, #tpu.memory_space<smem>>
    %163 = vector.broadcast %162 : f32 to vector<2x128xf32>
    %164 = arith.mulf %161, %163 : vector<2x128xf32>
    %165 = arith.addf %159, %164 : vector<2x128xf32>
    %166 = vector.extract_strided_slice %11 {offsets = [2, 0, 0], sizes = [1, 2, 128], strides = [1, 1, 1]} : vector<3x2x128xf32> to vector<1x2x128xf32>
    %167 = vector.shape_cast %166 : vector<1x2x128xf32> to vector<2x128xf32>
    %c2_79 = arith.constant 2 : index
    %c5_80 = arith.constant 5 : index
    %168 = memref.load %arg3[%c2_79, %c5_80] : memref<3x6xf32, #tpu.memory_space<smem>>
    %169 = vector.broadcast %168 : f32 to vector<2x128xf32>
    %170 = arith.mulf %167, %169 : vector<2x128xf32>
    %171 = arith.addf %165, %170 : vector<2x128xf32>
    %c5_81 = arith.constant 5 : index
    %172 = arith.index_cast %2 : i32 to index
    %173 = memref.load %arg4[%c5_81, %172] : memref<12x2xf32, #tpu.memory_space<smem>>
    %174 = vector.broadcast %173 : f32 to vector<2x128xf32>
    %175 = arith.addf %171, %174 : vector<2x128xf32>
    %c0_82 = arith.constant 0 : index
    %c5_83 = arith.constant 5 : index
    %c0_84 = arith.constant 0 : index
    %c0_85 = arith.constant 0 : index
    %176 = vector.load %arg6[%c0_82, %c5_83, %c0_84, %c0_85] : memref<2x6x2x128xf32, #tpu.memory_space<vmem>>, vector<1x1x2x128xf32>
    %177 = vector.shape_cast %176 : vector<1x1x2x128xf32> to vector<2x128xf32>
    %178 = vector.shape_cast %175 : vector<2x128xf32> to vector<1x1x2x128xf32>
    tpu.vector_store %arg6[%c0_82, %c5_83, %c0_84, %c0_85], %178 {strides = array<i32>} : memref<2x6x2x128xf32, #tpu.memory_space<vmem>>, vector<1x1x2x128xf32>,
    %c11 = arith.constant 11 : index
    %179 = arith.index_cast %2 : i32 to index
    %180 = memref.load %arg4[%c11, %179] : memref<12x2xf32, #tpu.memory_space<smem>>
    %181 = vector.broadcast %180 : f32 to vector<2x128xf32>
    %182 = arith.addf %171, %181 : vector<2x128xf32>
    %c1_86 = arith.constant 1 : index
    %c5_87 = arith.constant 5 : index
    %c0_88 = arith.constant 0 : index
    %c0_89 = arith.constant 0 : index
    %183 = vector.load %arg6[%c1_86, %c5_87, %c0_88, %c0_89] : memref<2x6x2x128xf32, #tpu.memory_space<vmem>>, vector<1x1x2x128xf32>
    %184 = vector.shape_cast %183 : vector<1x1x2x128xf32> to vector<2x128xf32>
    %185 = vector.shape_cast %182 : vector<2x128xf32> to vector<1x1x2x128xf32>
    tpu.vector_store %arg6[%c1_86, %c5_87, %c0_88, %c0_89], %185 {strides = array<i32>} : memref<2x6x2x128xf32, #tpu.memory_space<vmem>>, vector<1x1x2x128xf32>,
    return
  }
  func.func @transform_0(%arg0: i32, %arg1: i32) -> i32 {
    %c0_i32 = arith.constant 0 : i32
    %c0_i32_0 = arith.constant 0 : i32
    return %c0_i32 : i32
  }
  func.func @transform_1(%arg0: i32, %arg1: i32) -> (i32, i32) {
    %c0_i32 = arith.constant 0 : i32
    %c0_i32_0 = arith.constant 0 : i32
    %c0_i32_1 = arith.constant 0 : i32
    return %c0_i32, %c0_i32_0 : i32, i32
  }
  func.func @transform_2(%arg0: i32, %arg1: i32) -> (i32, i32) {
    %c0_i32 = arith.constant 0 : i32
    %c0_i32_0 = arith.constant 0 : i32
    %c0_i32_1 = arith.constant 0 : i32
    return %c0_i32, %c0_i32_0 : i32, i32
  }
  func.func @transform_3(%arg0: i32, %arg1: i32) -> (i32, i32, i32, i32) {
    %c0_i32 = arith.constant 0 : i32
    %c0_i32_0 = arith.constant 0 : i32
    %c0_i32_1 = arith.constant 0 : i32
    return %arg0, %c0_i32, %arg1, %c0_i32_0 : i32, i32, i32, i32
  }
  func.func @transform_4(%arg0: i32, %arg1: i32) -> (i32, i32, i32, i32) {
    %c0_i32 = arith.constant 0 : i32
    %c0_i32_0 = arith.constant 0 : i32
    %c0_i32_1 = arith.constant 0 : i32
    return %c0_i32, %arg0, %c0_i32_0, %arg1 : i32, i32, i32, i32
  }
}

</mosaic_0001>

<llo_original>
// kernel: quant_model_forward.1
$region0: #{quant_model_forward.1}
  #allocation0 [shape = 'u32[]', space=smem, size = 0x4, offset = 0x4, fixed_abs, tag = 'smem constant byte address 0x4 - core index']
  #allocation1 [shape = 'u32[144,128]{1,0:T(1,128)}', space=vmem, size = 0x12000, scoped, tag = 'internal scratch']
  #allocation2 [shape = 'f32[1]{0:T(128)S(6)}', space=smem, size = 0x200, scoped, tag = 'scoped memory for quant_model_forward.1']
  %s0 = inlined_call_operand.<no memory space> [shape: f32[1], index: 0, kind: input, shape index: {}]
  %s1 = inlined_call_operand.vmem [shape: f32[3,6], index: 1, kind: input, shape index: {}]
  %s2 = inlined_call_operand.vmem [shape: f32[12,2], index: 2, kind: input, shape index: {}]
  %s3 = inlined_call_operand.vmem [shape: f32[2,3,2,128], index: 3, kind: input, shape index: {}]
  %s4 = inlined_call_operand.vmem [shape: f32[2,12,2,128], index: 4, kind: output, shape index: {}]
  %s5 = sld [smem:[#allocation0]]
  $region94: #{quant_model_forward.1} parent=0
    _
  %s7 = ssub.s32 1, %s5
  %s8 = scalar_select 0, %s7, %s5
  %9 = sst [smem:[#allocation2]] %s0
  $region1: #{quant_model_forward.1} parent=0
    #allocation3 [shape = 'u8[2048]{0}', space=smem, size = 0x800, scoped, tag = 'input window, operand 1, single buffered']
    #allocation4 [shape = 's32[2]{0}', space=sflag, size = 0x8, scoped, tag = 'scoped memory for quant_model_forward.1']
    #allocation5 [shape = 'u8[8192]{0}', space=smem, size = 0x2000, scoped, tag = 'input window, operand 2, single buffered']
    #allocation6 [shape = 's32[1]{0}', space=sflag, size = 0x4, scoped, tag = 'scoped memory for quant_model_forward.1']
    #allocation7 [shape = 'u8[24576]{0}', space=vmem, size = 0x6000, scoped, tag = 'output window, operand 0']
    %10 = vsyncpa [#allocation4], 0
    %11 = vsyncpa [#allocation6], 0
    loop: start=0, step=1, limit=4
    $region2: #{quant_model_forward.1} parent=1 // loop_pre_header
      _
    $region3: #{quant_model_forward.1} parent=1 // loop_header
      %s13 = sphi 0, %s17
      %p14 = scmp.ge.s32.totalorder %s13, 4
      %s20 = sphi 0, %s32
      %s21 = sphi 0, %s28
      %s22 = sphi 0, %s20
      %s23 = sphi 0, %s21
      %s24 = sphi 0, %s22
      %s25 = sphi 0, %s23
      %s33 = sphi 0, %s33
      %s35 = sphi 0, %s33
      %s36 = sphi 0, %s35
      %s50 = sphi 0, %s36
      %s54 = sphi 0, %s54
      %s56 = sphi 0, %s54
      %s57 = sphi 0, %s56
      %s71 = sphi 0, %s57
      %s75 = sphi 0, %s75
      %s77 = sphi 0, %s75
      %s78 = sphi 0, %s77
      %s92 = sphi 0, %s78
      %s100 = sphi 0, %s102
      %s103 = sphi 0, %s100
      %s104 = sphi 0, %s103
      %s120 = sphi 0, %s104
      %s128 = sphi 0, %s130
      %s131 = sphi 0, %s128
      %s132 = sphi 0, %s131
      %s148 = sphi 0, %s132
    $region4: #{quant_model_forward.1} parent=1 // loop_header_branch
      %16 = sbr.rel (%p14) target = $region8
    $region5: #{quant_model_forward.1} parent=1 // loop_body
      %s18 = ssub.s32 %s13, 1
      %s19 = ssub.s32 %s13, 2
      %s26 = sadd.s32 1, %s21
      %p27 = scmp.ge.s32.totalorder %s26, 1
      %s28 = scalar_select %p27, 0, %s26
      %s29 = sadd.s32 1, %s20
      %s30 = scalar_select %p27, %s29, %s20
      %p31 = scmp.ge.s32.totalorder %s30, 2
      %s32 = scalar_select %p31, 0, %s30
      %s34 = sadd.s32 %s33, 1
      %p37 = scmp.eq.s32.totalorder %s13, 1
      %p38 = scmp.ne.s32.totalorder %s33, %s35
      %p39 = scmp.eq.s32.totalorder %s13, 0
      %p40 = por %p38, %p39
      %p41 = scmp.ne.s32.totalorder %s33, %s35
      %p42 = scmp.eq.s32.totalorder %s18, 1
      %p43 = por %p41, %p42
      %p44 = scmp.ne.s32.totalorder %s35, %s36
      %p45 = scmp.eq.s32.totalorder %s18, 0
      %p46 = por %p44, %p45
      %p47 = scmp.ne.s32.totalorder %s35, %s36
      %p48 = scmp.eq.s32.totalorder %s19, 1
      %p49 = por %p47, %p48
      %p51 = scmp.ne.s32.totalorder %s36, %s50
      %p52 = scmp.eq.s32.totalorder %s19, 0
      %p53 = por %p51, %p52
      %s55 = sadd.s32 %s54, 1
      %p58 = scmp.eq.s32.totalorder %s13, 1
      %p59 = scmp.ne.s32.totalorder %s54, %s56
      %p60 = scmp.eq.s32.totalorder %s13, 0
      %p61 = por %p59, %p60
      %p62 = scmp.ne.s32.totalorder %s54, %s56
      %p63 = scmp.eq.s32.totalorder %s18, 1
      %p64 = por %p62, %p63
      %p65 = scmp.ne.s32.totalorder %s56, %s57
      %p66 = scmp.eq.s32.totalorder %s18, 0
      %p67 = por %p65, %p66
      %p68 = scmp.ne.s32.totalorder %s56, %s57
      %p69 = scmp.eq.s32.totalorder %s19, 1
      %p70 = por %p68, %p69
      %p72 = scmp.ne.s32.totalorder %s57, %s71
      %p73 = scmp.eq.s32.totalorder %s19, 0
      %p74 = por %p72, %p73
      %s76 = sadd.s32 %s75, 1
      %p79 = scmp.eq.s32.totalorder %s13, 1
      %p80 = scmp.ne.s32.totalorder %s75, %s77
      %p81 = scmp.eq.s32.totalorder %s13, 0
      %p82 = por %p80, %p81
      %p83 = scmp.ne.s32.totalorder %s75, %s77
      %p84 = scmp.eq.s32.totalorder %s18, 1
      %p85 = por %p83, %p84
      %p86 = scmp.ne.s32.totalorder %s77, %s78
      %p87 = scmp.eq.s32.totalorder %s18, 0
      %p88 = por %p86, %p87
      %p89 = scmp.ne.s32.totalorder %s77, %s78
      %p90 = scmp.eq.s32.totalorder %s19, 1
      %p91 = por %p89, %p90
      %p93 = scmp.ne.s32.totalorder %s78, %s92
      %p94 = scmp.eq.s32.totalorder %s19, 0
      %p95 = por %p93, %p94
      %s96 = ssub.s32 %s20, %s32
      %s97 = ssub.s32 %s21, %s28
      %s98 = sor.u32 %s96, %s97
      %p99 = scmp.eq.s32.totalorder %s98, 0
      %s101 = sadd.s32 %s100, 1
      %s102 = scalar_select %p99, %s100, %s101
      %p105 = pneg %p99
      %p106 = scmp.eq.s32.totalorder %s13, 1
      %p107 = por %p105, %p106
      %p108 = scmp.ne.s32.totalorder %s100, %s103
      %p109 = scmp.eq.s32.totalorder %s13, 0
      %p110 = por %p108, %p109
      %p111 = scmp.ne.s32.totalorder %s100, %s103
      %p112 = scmp.eq.s32.totalorder %s18, 1
      %p113 = por %p111, %p112
      %p114 = scmp.ne.s32.totalorder %s103, %s104
      %p115 = scmp.eq.s32.totalorder %s18, 0
      %p116 = por %p114, %p115
      %p117 = scmp.ne.s32.totalorder %s103, %s104
      %p118 = scmp.eq.s32.totalorder %s19, 1
      %p119 = por %p117, %p118
      %p121 = scmp.ne.s32.totalorder %s104, %s120
      %p122 = scmp.eq.s32.totalorder %s19, 0
      %p123 = por %p121, %p122
      %s124 = ssub.s32 %s20, %s32
      %s125 = ssub.s32 %s21, %s28
      %s126 = sor.u32 %s124, %s125
      %p127 = scmp.eq.s32.totalorder %s126, 0
      %s129 = sadd.s32 %s128, 1
      %s130 = scalar_select %p127, %s128, %s129
      %p133 = pneg %p127
      %p134 = scmp.eq.s32.totalorder %s13, 1
      %p135 = por %p133, %p134
      %p136 = scmp.ne.s32.totalorder %s128, %s131
      %p137 = scmp.eq.s32.totalorder %s13, 0
      %p138 = por %p136, %p137
      %p139 = scmp.ne.s32.totalorder %s128, %s131
      %p140 = scmp.eq.s32.totalorder %s18, 1
      %p141 = por %p139, %p140
      %p142 = scmp.ne.s32.totalorder %s131, %s132
      %p143 = scmp.eq.s32.totalorder %s18, 0
      %p144 = por %p142, %p143
      %p145 = scmp.ne.s32.totalorder %s131, %s132
      %p146 = scmp.eq.s32.totalorder %s19, 1
      %p147 = por %p145, %p146
      %p149 = scmp.ne.s32.totalorder %s132, %s148
      %p150 = scmp.eq.s32.totalorder %s19, 0
      %p151 = por %p149, %p150
      %p152 = scmp.le.s32.totalorder 1, %s13
      %p153 = scmp.lt.s32.totalorder %s13, 3
      %p154 = pnand %p152, %p153
      %p155 = pneg %p154
      // Predicated region
      $region9: #{quant_model_forward.1} parent=5 // pred_check
        _
      $region10: #{quant_model_forward.1} parent=5 // pred_check_branch
        %157 = sbr.rel (%p154) target = $region12
      $region11: #{quant_model_forward.1} parent=5 // pred_region
        %s158 = ssub.s32 %s13, 1
        // Predicated region
        $region13: #{quant_model_forward.1} parent=11 // pred_check
          %p159 = pneg %p46
        $region14: #{quant_model_forward.1} parent=11 // pred_check_branch
          %161 = sbr.rel (%p159) target = $region16
        $region15: #{quant_model_forward.1} parent=11 // pred_region
          _
        $region16: #{quant_model_forward.1} parent=11 // pred_fallthru
          _
        // Predicated region
        $region17: #{quant_model_forward.1} parent=11 // pred_check
          %p162 = pneg %p67
        $region18: #{quant_model_forward.1} parent=11 // pred_check_branch
          %164 = sbr.rel (%p162) target = $region20
        $region19: #{quant_model_forward.1} parent=11 // pred_region
          %s166 = ssub.s32 64, 64
          %167 = vsyncadd [#allocation4], %s166
          %s169 = sshll.u32 %s1, 4
          %s170 = int_to_ptr.vmem [resolvable:$true] %s169
          %172 = dma.vmem_to_smem %s170, 64, [#allocation3], [#allocation4]
        $region20: #{quant_model_forward.1} parent=11 // pred_fallthru
          _
        // Predicated region
        $region21: #{quant_model_forward.1} parent=11 // pred_check
          %p173 = pneg %p88
        $region22: #{quant_model_forward.1} parent=11 // pred_check_branch
          %175 = sbr.rel (%p173) target = $region24
        $region23: #{quant_model_forward.1} parent=11 // pred_region
          %s177 = ssub.s32 256, 256
          %178 = vsyncadd [#allocation6], %s177
          %s179 = sshll.u32 %s2, 4
          %s180 = int_to_ptr.vmem [resolvable:$true] %s179
          %185 = dma.vmem_to_smem %s180, 256, [#allocation5], [#allocation6], 128, 128, 8
        $region24: #{quant_model_forward.1} parent=11 // pred_fallthru
          _
      $region12: #{quant_model_forward.1} parent=5 // pred_fallthru
        _
      %p186 = scmp.lt.s32.totalorder %s13, 2
      // Predicated region
      $region25: #{quant_model_forward.1} parent=5 // pred_check
        %p187 = pneg %p186
      $region26: #{quant_model_forward.1} parent=5 // pred_check_branch
        %189 = sbr.rel (%p187) target = $region28
      $region27: #{quant_model_forward.1} parent=5 // pred_region
        // Predicated region
        $region29: #{quant_model_forward.1} parent=27 // pred_check
          %p190 = pneg %p110
        $region30: #{quant_model_forward.1} parent=27 // pred_check_branch
          %192 = sbr.rel (%p190) target = $region32
        $region31: #{quant_model_forward.1} parent=27 // pred_region
          %p193 = scmp.lt.s32.totalorder %s20, 1
          %s194 = scalar_select %p193, %s20, 1
          %p195 = scmp.lt.s32.totalorder %s21, 0
          %s196 = scalar_select %p195, %s21, 0
          %s197 = smul.addr %s194, 3
          %s198 = sadd.s32 %s196, %s197
          %s199 = smul.addr %s198, 2
          %s200 = scalar_lea.vmem %s3, %s199
        $region32: #{quant_model_forward.1} parent=27 // pred_fallthru
          _
      $region28: #{quant_model_forward.1} parent=5 // pred_fallthru
        _
      %p201 = scmp.le.s32.totalorder 1, %s13
      %p202 = scmp.lt.s32.totalorder %s13, 3
      %p203 = pnand %p201, %p202
      %p204 = pneg %p203
      // Predicated region
      $region33: #{quant_model_forward.1} parent=5 // pred_check
        _
      $region34: #{quant_model_forward.1} parent=5 // pred_check_branch
        %206 = sbr.rel (%p203) target = $region36
      $region35: #{quant_model_forward.1} parent=5 // pred_region
        %s207 = ssub.s32 %s13, 1
        // Predicated region
        $region37: #{quant_model_forward.1} parent=35 // pred_check
          %p208 = pneg %p67
        $region38: #{quant_model_forward.1} parent=35 // pred_check_branch
          %210 = sbr.rel (%p208) target = $region40
        $region39: #{quant_model_forward.1} parent=35 // pred_region
          %211 = dma.done [#allocation4], 64
        $region40: #{quant_model_forward.1} parent=35 // pred_fallthru
          _
        // Predicated region
        $region41: #{quant_model_forward.1} parent=35 // pred_check
          %p212 = pneg %p88
        $region42: #{quant_model_forward.1} parent=35 // pred_check_branch
          %214 = sbr.rel (%p212) target = $region44
        $region43: #{quant_model_forward.1} parent=35 // pred_region
          %215 = dma.done [#allocation6], 256
        $region44: #{quant_model_forward.1} parent=35 // pred_fallthru
          _
        %216 = sfence
        %p217 = pneg %p46
        %p218 = pneg %p43
        %p219 = pneg %p67
        %p220 = pneg %p64
        %p221 = pneg %p88
        %p222 = pneg %p85
        %p223 = scmp.lt.s32.totalorder %s22, 1
        %s224 = scalar_select %p223, %s22, 1
        %p225 = scmp.lt.s32.totalorder %s23, 0
        %s226 = scalar_select %p225, %s23, 0
        %s227 = smul.addr %s224, 3
        %s228 = sadd.s32 %s226, %s227
        %s229 = smul.addr %s228, 2
        %s230 = scalar_lea.vmem %s3, %s229
        %p231 = pneg %p116
        %p232 = pneg %p113
        %p233 = pneg %p144
        %p234 = pneg %p141
        %s235 = sand.u32 %s131, 1
        %s236 = sand.u32 %s131, 1
        %s237 = smul.addr %s236, 24
        %s238 = scalar_lea.vmem [#allocation7], %s237
        %p239 = scmp.lt.s32.totalorder %s22, 1
        %s240 = scalar_select %p239, %s22, 1
        %p241 = scmp.lt.s32.totalorder %s23, 0
        %s242 = scalar_select %p241, %s23, 0
        %s243 = smul.addr %s240, 3
        %s244 = sadd.s32 %s242, %s243
        %s245 = smul.addr %s244, 2
        %s246 = scalar_lea.vmem %s3, %s245
        %s247 = smul.u32 6, %s22
        %s248 = sld [smem:[#allocation2]]
        %v249 = vld [vmem:[%s246] sm:$0x3]
        %v250 = vld [vmem:[%s246 + $0x2] sm:$0x3]
        %v251 = vld [vmem:[%s246 + $0x4] sm:$0x3]
        %v252 = vstv %s248
        %v253 = vmul.f32 %v249, %v252
        %v254 = vmul.f32 %v250, %v252
        %v255 = vmul.f32 %v251, %v252
        %v256 = vround.ne.pseudo %v253
        %v257 = vround.ne.pseudo %v254
        %v258 = vround.ne.pseudo %v255
        %v259 = vmax.f32 %v256, -128.0
        %v260 = vmax.f32 %v257, -128.0
        %v261 = vmax.f32 %v258, -128.0
        %v262 = vmin.f32 %v259, 127.0
        %v263 = vmin.f32 %v260, 127.0
        %v264 = vmin.f32 %v261, 127.0
        %s265 = sld [smem:[#allocation3]]
        %v266 = vstv %s265
        %v267 = vmul.f32 %v262, %v266
        %s268 = sld [smem:[#allocation3 + $0x80]]
        %v269 = vstv %s268
        %v270 = vmul.f32 %v263, %v269
        %v271 = vadd.f32 %v267, %v270
        %s272 = sld [smem:[#allocation3 + $0x100]]
        %v273 = vstv %s272
        %v274 = vmul.f32 %v264, %v273
        %v275 = vadd.f32 %v271, %v274
        %s276 = sld [smem:[#allocation5 + %s22]]
        %v277 = vstv %s276
        %v278 = vadd.f32 %v275, %v277
        %279 = vst [vmem:[%s238] sm:$0x3] %v278
        %s280 = scalar_lea.vmem %s238, 12 [#allocation7]
        %281 = vst [vmem:[%s280] sm:$0x3] %v278
        %s282 = sld [smem:[#allocation3 + $0x1]]
        %v283 = vstv %s282
        %v284 = vmul.f32 %v262, %v283
        %s285 = sld [smem:[#allocation3 + $0x81]]
        %v286 = vstv %s285
        %v287 = vmul.f32 %v263, %v286
        %v288 = vadd.f32 %v284, %v287
        %s289 = sld [smem:[#allocation3 + $0x101]]
        %v290 = vstv %s289
        %v291 = vmul.f32 %v264, %v290
        %v292 = vadd.f32 %v288, %v291
        %s293 = sshra.s32 %s22, 7
        %s294 = sand.u32 %s22, 127
        %s295 = sadd.s32 %s293, 1
        %s296 = smul.u32 %s295, 128
        %s297 = sshra.s32 %s22, 7
        %s298 = sand.u32 %s22, 127
        %s299 = sadd.s32 %s296, %s298
        %s300 = sld [smem:[#allocation5 + %s299]]
        %v301 = vstv %s300
        %v302 = vadd.f32 %v292, %v301
        %s303 = scalar_lea.vmem %s238, 2 [#allocation7]
        %304 = vst [vmem:[%s303] sm:$0x3] %v302
        %s305 = scalar_lea.vmem %s238, 14 [#allocation7]
        %306 = vst [vmem:[%s305] sm:$0x3] %v302
        %s307 = sld [smem:[#allocation3 + $0x2]]
        %v308 = vstv %s307
        %v309 = vmul.f32 %v262, %v308
        %s310 = sld [smem:[#allocation3 + $0x82]]
        %v311 = vstv %s310
        %v312 = vmul.f32 %v263, %v311
        %v313 = vadd.f32 %v309, %v312
        %s314 = sld [smem:[#allocation3 + $0x102]]
        %v315 = vstv %s314
        %v316 = vmul.f32 %v264, %v315
        %v317 = vadd.f32 %v313, %v316
        %s318 = sadd.s32 %s293, 2
        %s319 = smul.u32 %s318, 128
        %s320 = sadd.s32 %s319, %s298
        %s321 = sld [smem:[#allocation5 + %s320]]
        %v322 = vstv %s321
        %v323 = vadd.f32 %v317, %v322
        %s324 = scalar_lea.vmem %s238, 4 [#allocation7]
        %325 = vst [vmem:[%s324] sm:$0x3] %v323
        %s326 = scalar_lea.vmem %s238, 16 [#allocation7]
        %327 = vst [vmem:[%s326] sm:$0x3] %v323
        %s328 = sld [smem:[#allocation3 + $0x3]]
        %v329 = vstv %s328
        %v330 = vmul.f32 %v262, %v329
        %s331 = sld [smem:[#allocation3 + $0x83]]
        %v332 = vstv %s331
        %v333 = vmul.f32 %v263, %v332
        %v334 = vadd.f32 %v330, %v333
        %s335 = sld [smem:[#allocation3 + $0x103]]
        %v336 = vstv %s335
        %v337 = vmul.f32 %v264, %v336
        %v338 = vadd.f32 %v334, %v337
        %s339 = sadd.s32 %s293, 3
        %s340 = smul.u32 %s339, 128
        %s341 = sadd.s32 %s340, %s298
        %s342 = sld [smem:[#allocation5 + %s341]]
        %v343 = vstv %s342
        %v344 = vadd.f32 %v338, %v343
        %s345 = scalar_lea.vmem %s238, 6 [#allocation7]
        %346 = vst [vmem:[%s345] sm:$0x3] %v344
        %s347 = sadd.s32 %s293, 9
        %s348 = smul.u32 %s347, 128
        %s349 = sadd.s32 %s348, %s298
        %s350 = sld [smem:[#allocation5 + %s349]]
        %v351 = vstv %s350
        %v352 = vadd.f32 %v338, %v351
        %s353 = scalar_lea.vmem %s238, 18 [#allocation7]
        %354 = vst [vmem:[%s353] sm:$0x3] %v352
        %s355 = sld [smem:[#allocation3 + $0x4]]
        %v356 = vstv %s355
        %v357 = vmul.f32 %v262, %v356
        %s358 = sld [smem:[#allocation3 + $0x84]]
        %v359 = vstv %s358
        %v360 = vmul.f32 %v263, %v359
        %v361 = vadd.f32 %v357, %v360
        %s362 = sld [smem:[#allocation3 + $0x104]]
        %v363 = vstv %s362
        %v364 = vmul.f32 %v264, %v363
        %v365 = vadd.f32 %v361, %v364
        %s366 = sadd.s32 %s293, 4
        %s367 = smul.u32 %s366, 128
        %s368 = sadd.s32 %s367, %s298
        %s369 = sld [smem:[#allocation5 + %s368]]
        %v370 = vstv %s369
        %v371 = vadd.f32 %v365, %v370
        %s372 = scalar_lea.vmem %s238, 8 [#allocation7]
        %373 = vst [vmem:[%s372] sm:$0x3] %v371
        %s374 = sadd.s32 %s293, 10
        %s375 = smul.u32 %s374, 128
        %s376 = sadd.s32 %s375, %s298
        %s377 = sld [smem:[#allocation5 + %s376]]
        %v378 = vstv %s377
        %v379 = vadd.f32 %v365, %v378
        %s380 = scalar_lea.vmem %s238, 20 [#allocation7]
        %381 = vst [vmem:[%s380] sm:$0x3] %v379
        %s382 = sld [smem:[#allocation3 + $0x5]]
        %v383 = vstv %s382
        %v384 = vmul.f32 %v262, %v383
        %s385 = sld [smem:[#allocation3 + $0x85]]
        %v386 = vstv %s385
        %v387 = vmul.f32 %v263, %v386
        %v388 = vadd.f32 %v384, %v387
        %s389 = sld [smem:[#allocation3 + $0x105]]
        %v390 = vstv %s389
        %v391 = vmul.f32 %v264, %v390
        %v392 = vadd.f32 %v388, %v391
        %s393 = sadd.s32 %s293, 5
        %s394 = smul.u32 %s393, 128
        %s395 = sadd.s32 %s394, %s298
        %s396 = sld [smem:[#allocation5 + %s395]]
        %v397 = vstv %s396
        %v398 = vadd.f32 %v392, %v397
        %s399 = scalar_lea.vmem %s238, 10 [#allocation7]
        %400 = vst [vmem:[%s399] sm:$0x3] %v398
        %s401 = sadd.s32 %s293, 11
        %s402 = smul.u32 %s401, 128
        %s403 = sadd.s32 %s402, %s298
        %s404 = sld [smem:[#allocation5 + %s403]]
        %v405 = vstv %s404
        %v406 = vadd.f32 %v392, %v405
        %s407 = scalar_lea.vmem %s238, 22 [#allocation7]
        %408 = vst [vmem:[%s407] sm:$0x3] %v406
        %s409 = sand.u32 %s131, 1
        %s410 = sand.u32 %s131, 1
        %s411 = smul.addr %s410, 24
        %s412 = scalar_lea.vmem [#allocation7], %s411
        // Predicated region
        $region45: #{quant_model_forward.1} parent=35 // pred_check
          %p413 = pneg %p141
        $region46: #{quant_model_forward.1} parent=35 // pred_check_branch
          %415 = sbr.rel (%p413) target = $region48
        $region47: #{quant_model_forward.1} parent=35 // pred_region
          %s416 = smul.u32 6, %s22
          %s417 = sadd.s32 %s23, %s416
          %s418 = smul.addr %s417, 2
          %s419 = scalar_lea.vmem %s4, %s418
          // Predicated region
          $region49: #{quant_model_forward.1} parent=47 // pred_check
            _
          $region50: #{quant_model_forward.1} parent=47 // pred_check_branch
            %421 = sbr.rel (0) target = $region52
          $region51: #{quant_model_forward.1} parent=47 // pred_region
            // Predicated region
            $region53: #{quant_model_forward.1} parent=51 // pred_check
              _
            $region54: #{quant_model_forward.1} parent=51 // pred_check_branch
              %423 = sbr.rel target = $region56
            $region55: #{quant_model_forward.1} parent=51 // pred_region
              // Predicated region
              $region68: #{quant_model_forward.1} parent=55 // pred_check
                _
              $region69: #{quant_model_forward.1} parent=55 // pred_check_branch
                %461 = sbr.rel (0) target = $region71
              $region70: #{quant_model_forward.1} parent=55 // pred_region
                loop: start=0, step=1, limit=1
                $region72: #{quant_model_forward.1} parent=70 // loop_pre_header
                  _
                $region73: #{quant_model_forward.1} parent=70 // loop_header
                  %s463 = sphi 0, %s467
                  %p464 = scmp.ge.s32.totalorder %s463, 1
                  %s468 = sphi %s412, %s412
                  %s469 = sphi %s419, %s419
                $region74: #{quant_model_forward.1} parent=70 // loop_header_branch
                  %466 = sbr.rel (%p464) target = $region78
                $region75: #{quant_model_forward.1} parent=70 // loop_body
                  _
                $region76: #{quant_model_forward.1} parent=70 // loop_footer
                  %s467 = sadd.s32 1, %s463
                $region77: #{quant_model_forward.1} parent=70 // loop_footer_branch
                  %462 = sbr.rel target = $region73
                $region78: #{quant_model_forward.1} parent=70 // loop_exit
                  _
                %s471 = ssub.s32 4, 1
                loop: start=0, step=1, limit=1
                $region79: #{quant_model_forward.1} parent=70 // loop_pre_header
                  _
                $region80: #{quant_model_forward.1} parent=70 // loop_header
                  %s473 = sphi 0, %s477
                  %p474 = scmp.ge.s32.totalorder %s473, 1
                  %s478 = sphi %s412, %s412
                  %s479 = sphi %s419, %s419
                $region81: #{quant_model_forward.1} parent=70 // loop_header_branch
                  %476 = sbr.rel (%p474) target = $region85
                $region82: #{quant_model_forward.1} parent=70 // loop_body
                  %v480 = vld [vmem:[%s478] sm:%s471]
                  %481 = vst [vmem:[%s479] sm:%s471] %v480
                  %v482 = vld [vmem:[%s478 + $0x2] sm:%s471]
                  %483 = vst [vmem:[%s479 + $0x2] sm:%s471] %v482
                  %v484 = vld [vmem:[%s478 + $0x4] sm:%s471]
                  %485 = vst [vmem:[%s479 + $0x4] sm:%s471] %v484
                  %v486 = vld [vmem:[%s478 + $0x6] sm:%s471]
                  %487 = vst [vmem:[%s479 + $0x6] sm:%s471] %v486
                  %v488 = vld [vmem:[%s478 + $0x8] sm:%s471]
                  %489 = vst [vmem:[%s479 + $0x8] sm:%s471] %v488
                  %v490 = vld [vmem:[%s478 + $0xa] sm:%s471]
                  %491 = vst [vmem:[%s479 + $0xa] sm:%s471] %v490
                  %v492 = vld [vmem:[%s478 + $0xc] sm:%s471]
                  %493 = vst [vmem:[%s479 + $0x18] sm:%s471] %v492
                  %v494 = vld [vmem:[%s478 + $0xe] sm:%s471]
                  %495 = vst [vmem:[%s479 + $0x1a] sm:%s471] %v494
                  %v496 = vld [vmem:[%s478 + $0x10] sm:%s471]
                  %497 = vst [vmem:[%s479 + $0x1c] sm:%s471] %v496
                  %v498 = vld [vmem:[%s478 + $0x12] sm:%s471]
                  %499 = vst [vmem:[%s479 + $0x1e] sm:%s471] %v498
                  %v500 = vld [vmem:[%s478 + $0x14] sm:%s471]
                  %501 = vst [vmem:[%s479 + $0x20] sm:%s471] %v500
                  %v502 = vld [vmem:[%s478 + $0x16] sm:%s471]
                  %503 = vst [vmem:[%s479 + $0x22] sm:%s471] %v502
                $region83: #{quant_model_forward.1} parent=70 // loop_footer
                  %s477 = sadd.s32 1, %s473
                $region84: #{quant_model_forward.1} parent=70 // loop_footer_branch
                  %472 = sbr.rel target = $region80
                $region85: #{quant_model_forward.1} parent=70 // loop_exit
                  _
              $region71: #{quant_model_forward.1} parent=55 // pred_fallthru
                _
            $region56: #{quant_model_forward.1} parent=51 // pred_fallthru
              _
            // Predicated region
            $region57: #{quant_model_forward.1} parent=51 // pred_check
              _
            $region58: #{quant_model_forward.1} parent=51 // pred_check_branch
              %425 = sbr.rel (0) target = $region60
            $region59: #{quant_model_forward.1} parent=51 // pred_region
              %s427 = ssub.s32 4, 1
              loop: start=0, step=1, limit=1
              $region61: #{quant_model_forward.1} parent=59 // loop_pre_header
                _
              $region62: #{quant_model_forward.1} parent=59 // loop_header
                %s429 = sphi 0, %s433
                %p430 = scmp.ge.s32.totalorder %s429, 1
                %s434 = sphi %s412, %s412
                %s435 = sphi %s419, %s419
              $region63: #{quant_model_forward.1} parent=59 // loop_header_branch
                %432 = sbr.rel (%p430) target = $region67
              $region64: #{quant_model_forward.1} parent=59 // loop_body
                %v436 = vld [vmem:[%s434] sm:%s427]
                %437 = vst [vmem:[%s435] sm:%s427] %v436
                %v438 = vld [vmem:[%s434 + $0x2] sm:%s427]
                %439 = vst [vmem:[%s435 + $0x2] sm:%s427] %v438
                %v440 = vld [vmem:[%s434 + $0x4] sm:%s427]
                %441 = vst [vmem:[%s435 + $0x4] sm:%s427] %v440
                %v442 = vld [vmem:[%s434 + $0x6] sm:%s427]
                %443 = vst [vmem:[%s435 + $0x6] sm:%s427] %v442
                %v444 = vld [vmem:[%s434 + $0x8] sm:%s427]
                %445 = vst [vmem:[%s435 + $0x8] sm:%s427] %v444
                %v446 = vld [vmem:[%s434 + $0xa] sm:%s427]
                %447 = vst [vmem:[%s435 + $0xa] sm:%s427] %v446
                %v448 = vld [vmem:[%s434 + $0xc] sm:%s427]
                %449 = vst [vmem:[%s435 + $0x18] sm:%s427] %v448
                %v450 = vld [vmem:[%s434 + $0xe] sm:%s427]
                %451 = vst [vmem:[%s435 + $0x1a] sm:%s427] %v450
                %v452 = vld [vmem:[%s434 + $0x10] sm:%s427]
                %453 = vst [vmem:[%s435 + $0x1c] sm:%s427] %v452
                %v454 = vld [vmem:[%s434 + $0x12] sm:%s427]
                %455 = vst [vmem:[%s435 + $0x1e] sm:%s427] %v454
                %v456 = vld [vmem:[%s434 + $0x14] sm:%s427]
                %457 = vst [vmem:[%s435 + $0x20] sm:%s427] %v456
                %v458 = vld [vmem:[%s434 + $0x16] sm:%s427]
                %459 = vst [vmem:[%s435 + $0x22] sm:%s427] %v458
              $region65: #{quant_model_forward.1} parent=59 // loop_footer
                %s433 = sadd.s32 1, %s429
              $region66: #{quant_model_forward.1} parent=59 // loop_footer_branch
                %428 = sbr.rel target = $region62
              $region67: #{quant_model_forward.1} parent=59 // loop_exit
                _
            $region60: #{quant_model_forward.1} parent=51 // pred_fallthru
              _
          $region52: #{quant_model_forward.1} parent=47 // pred_fallthru
            _
          %504 = vnop
        $region48: #{quant_model_forward.1} parent=35 // pred_fallthru
          _
      $region36: #{quant_model_forward.1} parent=5 // pred_fallthru
        _
      %p505 = scmp.le.s32.totalorder 2, %s13
      // Predicated region
      $region86: #{quant_model_forward.1} parent=5 // pred_check
        %p506 = pneg %p505
      $region87: #{quant_model_forward.1} parent=5 // pred_check_branch
        %508 = sbr.rel (%p506) target = $region89
      $region88: #{quant_model_forward.1} parent=5 // pred_region
        %s509 = ssub.s32 %s13, 2
        // Predicated region
        $region90: #{quant_model_forward.1} parent=88 // pred_check
          %p510 = pneg %p147
        $region91: #{quant_model_forward.1} parent=88 // pred_check_branch
          %512 = sbr.rel (%p510) target = $region93
        $region92: #{quant_model_forward.1} parent=88 // pred_region
          %s513 = sand.u32 %s132, 1
          %s514 = sand.u32 %s132, 1
          %s515 = smul.addr %s514, 24
          %s516 = scalar_lea.vmem [#allocation7], %s515
        $region93: #{quant_model_forward.1} parent=88 // pred_fallthru
          _
      $region89: #{quant_model_forward.1} parent=5 // pred_fallthru
        _
    $region6: #{quant_model_forward.1} parent=1 // loop_footer
      %s17 = sadd.s32 1, %s13
    $region7: #{quant_model_forward.1} parent=1 // loop_footer_branch
      %12 = sbr.rel target = $region3
    $region8: #{quant_model_forward.1} parent=1 // loop_exit
      _
    %517 = vsyncpa [#allocation4], 1
    %s518 = scalar_lea.sflag [#allocation4], 1
    %519 = vsyncpa %s518, 1
    %520 = vsyncpa [#allocation6], 1

</llo_original>
